<compile_context>
chip_gen: v7x
topology: tpu7x:2x2x1
jax: 0.10.0
libtpu: 0.0.40
codegen_flags: <defaults>
</compile_context>

<pallas_src>
import jax
import jax.numpy as jnp
from jax.experimental import pallas as pl
from jax.experimental.pallas import tpu as pltpu

NEG_SLOPE = 0.01  # torch.nn.LeakyReLU default


def _round_up(v, n):
    return ((v + n - 1) // n) * n


def _tpu_config():
    """Best-effort generation detection -> (vmem_limit_bytes, feature_align, two_tensorcores)."""
    kind = ""
    try:
        kind = jax.devices()[0].device_kind.lower()
    except Exception:
        pass
    phys = None
    try:
        phys = int(pltpu.get_tpu_info().vmem_capacity_bytes)
    except Exception:
        phys = None
    if phys is None:
        # v5e / v6e have 128 MiB physical VMEM; v7x only 64 MiB. Conservative when unknown.
        phys = 128 * 1024 * 1024 if ("v5" in kind or "v6" in kind) else 64 * 1024 * 1024
    vmem_limit = min(phys - 16 * 1024 * 1024, 100 * 1024 * 1024)
    vmem_limit = max(vmem_limit, 32 * 1024 * 1024)
    # v6e / v7x MXU is 2x256x256 -> 256-aligned feature dims; 128 is enough for <=v5.
    older = any(t in kind for t in ("v2", "v3", "v4", "v5"))
    align = 128 if older else 256
    two_tc = "7" in kind  # v7x: 2 TensorCores per chip
    return int(vmem_limit), align, two_tc


# ------------------------------ kernels ------------------------------


def _ffn_resident_kernel(x_ref, w1_ref, b1_ref, w2_ref, b2_ref, o_ref):
    # Whole FFN on one token tile; W1/W2/b1/b2 are fully VMEM-resident (DMA'd once).
    h = jnp.dot(x_ref[...], w1_ref[...], preferred_element_type=jnp.float32)
    h = h + b1_ref[...].astype(jnp.float32)
    h = jnp.maximum(h, NEG_SLOPE * h)  # LeakyReLU
    # Dropout(p=0, eval) is the identity.
    # TODO(synk): training-mode dropout (p > 0) would need pltpu.prng_* masking.
    y = jnp.dot(h.astype(w2_ref.dtype), w2_ref[...], preferred_element_type=jnp.float32)
    o_ref[...] = (y + b2_ref[...].astype(jnp.float32)).astype(o_ref.dtype)


def _ffn_streamed_kernel(x_ref, w1_ref, b1_ref, w2_ref, b2_ref, o_ref, acc_ref):
    # Fallback: hidden axis streamed in chunks, f32 VMEM accumulator for the 2nd matmul.
    kh = pl.program_id(1)

    @pl.when(kh == 0)
    def _():
        acc_ref[...] = jnp.zeros_like(acc_ref)

    h = jnp.dot(x_ref[...], w1_ref[...], preferred_element_type=jnp.float32)
    h = h + b1_ref[...].astype(jnp.float32)
    h = jnp.maximum(h, NEG_SLOPE * h)  # LeakyReLU (elementwise -> per-chunk correct)
    acc_ref[...] += jnp.dot(h.astype(w2_ref.dtype), w2_ref[...],
                            preferred_element_type=jnp.float32)

    @pl.when(kh == pl.num_programs(1) - 1)
    def _():
        o_ref[...] = (acc_ref[...] + b2_ref[...].astype(jnp.float32)).astype(o_ref.dtype)


# ------------------------------ wrapper ------------------------------


def prepare_ffn_params(w1, b1, w2, b2, *, align=None):
    """Pad parameters once, OUTSIDE the per-call hot path.

    w1:[dim, hidden], b1:[1, hidden] (or [hidden]), w2:[hidden, dim], b2:[1, dim] (or [dim]).
    dim is padded to the MXU alignment; hidden to a multiple of 512 (divisor-safe th).
    """
    if align is None:
        _, align, _ = _tpu_config()
    dim, hidden = w1.shape
    dim_p = _round_up(dim, align)
    hid_p = _round_up(hidden, max(512, align))
    w1_p = jnp.pad(w1, ((0, dim_p - dim), (0, hid_p - hidden)))
    b1_p = jnp.pad(jnp.reshape(b1, (1, -1)), ((0, 0), (0, hid_p - hidden)))
    w2_p = jnp.pad(w2, ((0, hid_p - hidden), (0, dim_p - dim)))
    b2_p = jnp.pad(jnp.reshape(b2, (1, -1)), ((0, 0), (0, dim_p - dim)))
    return {"w1": w1_p, "b1": b1_p, "w2": w2_p, "b2": b2_p, "dim": dim, "hidden": hidden}


def feed_forward(x, params, *, tm_target=512):
    """x: [..., dim]; params from prepare_ffn_params (weights already padded)."""
    dim = params["dim"]
    w1_p, b1_p, w2_p, b2_p = params["w1"], params["b1"], params["w2"], params["b2"]
    dim_p, hid_p = w1_p.shape

    orig_shape = x.shape
    x2d = x.reshape(-1, dim)
    m = x2d.shape[0]

    vmem_limit, _align, two_tc = _tpu_config()
    x_itemsize = jnp.dtype(x.dtype).itemsize
    w_itemsize = jnp.dtype(w1_p.dtype).itemsize
    sub = 16 if x_itemsize == 2 else 8  # sublane packing (bf16 vs f32)
    budget = int(vmem_limit * 0.9)

    # ---- token (M) tiling: near-divisor tiles, sublane-rounded ----
    n_m = max(1, pl.cdiv(m, tm_target))
    if two_tc and n_m < 2 and m > sub:
        n_m = 2  # give the second v7x TensorCore work for small-M shapes
    tm = _round_up(pl.cdiv(m, n_m), sub)

    # ---- VMEM budgets for the two modes (double-buffered BlockSpec inputs) ----
    def resident_bytes(tm_):
        return (2 * 2 * dim_p * hid_p * w_itemsize          # W1 + W2
                + 2 * 2 * (hid_p + dim_p) * w_itemsize      # b1 + b2
                + 2 * 2 * tm_ * dim_p * x_itemsize)         # x + out

    def streamed_bytes(tm_, th_):
        return (2 * 2 * tm_ * dim_p * x_itemsize            # x + out
                + 2 * (dim_p * th_ + th_ * dim_p) * w_itemsize
                + 2 * (th_ + dim_p) * w_itemsize
                + tm_ * dim_p * 4)                           # f32 accumulator

    use_resident = resident_bytes(tm) <= budget

    th = min(512, hid_p)
    if not use_resident:
        # Shrink th first (only changes step count), then tm (changes arithmetic intensity).
        while th > 128 and streamed_bytes(tm, th) > budget:
            th //= 2  # 512 -> 256 -> 128, all divide hid_p (multiple of 512)
        while tm > sub and streamed_bytes(tm, th) > budget:
            tm = max(sub, _round_up(tm // 2, sub))
        n_m = pl.cdiv(m, tm)

    m_p = n_m * tm
    x_p = x2d
    if m_p != m or dim_p != dim:
        x_p = jnp.pad(x2d, ((0, m_p - m), (0, dim_p - dim)))

    flops = 4 * m_p * dim_p * hid_p

    if use_resident:
        cost = pl.CostEstimate(
            flops=int(flops), transcendentals=0,
            bytes_accessed=int(2 * m_p * dim_p * x_itemsize
                               + (2 * dim_p * hid_p + hid_p + dim_p) * w_itemsize))
        out_p = pl.pallas_call(
            _ffn_resident_kernel,
            out_shape=jax.ShapeDtypeStruct((m_p, dim_p), x.dtype),
            grid_spec=pltpu.PrefetchScalarGridSpec(
                num_scalar_prefetch=0,
                grid=(n_m,),
                in_specs=[
                    pl.BlockSpec((tm, dim_p),    lambda i: (i, 0)),  # x tile
                    pl.BlockSpec((dim_p, hid_p), lambda i: (0, 0)),  # W1 resident (DMA once)
                    pl.BlockSpec((1, hid_p),     lambda i: (0, 0)),  # b1 resident
                    pl.BlockSpec((hid_p, dim_p), lambda i: (0, 0)),  # W2 resident (DMA once)
                    pl.BlockSpec((1, dim_p),     lambda i: (0, 0)),  # b2 resident
                ],
                out_specs=pl.BlockSpec((tm, dim_p), lambda i: (i, 0)),
            ),
            compiler_params=pltpu.CompilerParams(
                dimension_semantics=("parallel",),
                vmem_limit_bytes=int(vmem_limit)),
            cost_estimate=cost,
        )(x_p, w1_p, b1_p, w2_p, b2_p)
    else:
        n_h = hid_p // th
        cost = pl.CostEstimate(
            flops=int(flops), transcendentals=0,
            bytes_accessed=int(2 * m_p * dim_p * x_itemsize
                               + n_m * 2 * dim_p * hid_p * w_itemsize   # weights re-streamed
                               + (hid_p + dim_p) * w_itemsize))
        out_p = pl.pallas_call(
            _ffn_streamed_kernel,
            out_shape=jax.ShapeDtypeStruct((m_p, dim_p), x.dtype),
            grid_spec=pltpu.PrefetchScalarGridSpec(
                num_scalar_prefetch=0,
                grid=(n_m, n_h),
                in_specs=[
                    pl.BlockSpec((tm, dim_p), lambda i, k: (i, 0)),   # x tile (resident over k)
                    pl.BlockSpec((dim_p, th), lambda i, k: (0, k)),   # W1 hidden chunk
                    pl.BlockSpec((1, th),     lambda i, k: (0, k)),   # b1 hidden chunk
                    pl.BlockSpec((th, dim_p), lambda i, k: (k, 0)),   # W2 hidden chunk
                    pl.BlockSpec((1, dim_p),  lambda i, k: (0, 0)),   # b2 (resident)
                ],
                out_specs=pl.BlockSpec((tm, dim_p), lambda i, k: (i, 0)),
                scratch_shapes=[pltpu.VMEM((tm, dim_p), jnp.float32)],
            ),
            compiler_params=pltpu.CompilerParams(
                dimension_semantics=("parallel", "arbitrary"),
                vmem_limit_bytes=int(vmem_limit)),
            cost_estimate=cost,
        )(x_p, w1_p, b1_p, w2_p, b2_p)

    return out_p[:m, :dim].reshape(orig_shape)


def init_params(key, dim, mult=4, dtype=jnp.float32):
    """Deterministic parameter init matching nn.Linear shapes (stored transposed)."""
    hidden = dim * mult
    k1, k2, k3, k4 = jax.random.split(key, 4)
    lim1 = 1.0 / jnp.sqrt(dim)
    lim2 = 1.0 / jnp.sqrt(hidden)
    w1 = jax.random.uniform(k1, (dim, hidden), dtype, -lim1, lim1)
    b1 = jax.random.uniform(k2, (1, hidden), dtype, -lim1, lim1)
    w2 = jax.random.uniform(k3, (hidden, dim), dtype, -lim2, lim2)
    b2 = jax.random.uniform(k4, (1, dim), dtype, -lim2, lim2)
    return w1, b1, w2, b2


if __name__ == "__main__":
    key = jax.random.PRNGKey(0)
    kx, kp = jax.random.split(key)

    B, S, DIM, MULT = 2, 8, 32, 4
    x = jax.random.normal(kx, (B, S, DIM), dtype=jnp.float32)
    w1, b1, w2, b2 = init_params(kp, DIM, MULT)
    params = prepare_ffn_params(w1, b1, w2, b2)   # pad once, outside the hot path

    y = jax.block_until_ready(feed_forward(x, params))

    # Pure-JAX reference check (dtype-aware tolerance)
    h_ref = x.reshape(-1, DIM) @ w1 + b1
    h_ref = jnp.maximum(h_ref, NEG_SLOPE * h_ref)
    y_ref = (h_ref @ w2 + b2).reshape(B, S, DIM)
    tol = 2e-2 if x.dtype == jnp.bfloat16 else 1e-5
    assert jnp.allclose(y, y_ref, atol=tol, rtol=tol), "mismatch vs reference"

    print("KERNEL_OK")
</pallas_src>

<mosaic_0001>
module attributes {stable_mosaic.version = 11 : i64} {
  func.func @_ffn_resident_kernel(%arg0: i32, %arg1: memref<16x256xf32, #tpu.memory_space<vmem>>, %arg2: memref<256x512xf32, #tpu.memory_space<vmem>>, %arg3: memref<1x512xf32, #tpu.memory_space<vmem>>, %arg4: memref<512x256xf32, #tpu.memory_space<vmem>>, %arg5: memref<1x256xf32, #tpu.memory_space<vmem>>, %arg6: memref<16x256xf32, #tpu.memory_space<vmem>>) attributes {dimension_semantics = [#tpu.dimension_semantics<parallel>], iteration_bounds = array<i64: 1>, scalar_prefetch = 0 : i64, scratch_operands = 0 : i64, tpu.core_type = #tpu.core_type<tc>, window_params = [{transform_indices = @transform_0, window_bounds = array<i64: 16, 256>}, {pipeline_mode = #tpu.pipeline_mode<synchronous>, transform_indices = @transform_1, window_bounds = array<i64: 256, 512>}, {pipeline_mode = #tpu.pipeline_mode<synchronous>, transform_indices = @transform_2, window_bounds = array<i64: 1, 512>}, {pipeline_mode = #tpu.pipeline_mode<synchronous>, transform_indices = @transform_3, window_bounds = array<i64: 512, 256>}, {pipeline_mode = #tpu.pipeline_mode<synchronous>, transform_indices = @transform_4, window_bounds = array<i64: 1, 256>}, {transform_indices = @transform_5, window_bounds = array<i64: 16, 256>}]} {
    %c0 = arith.constant 0 : index
    %c0_0 = arith.constant 0 : index
    %0 = vector.load %arg1[%c0, %c0_0] : memref<16x256xf32, #tpu.memory_space<vmem>>, vector<16x256xf32>
    %c0_1 = arith.constant 0 : index
    %c0_2 = arith.constant 0 : index
    %1 = vector.load %arg2[%c0_1, %c0_2] : memref<256x512xf32, #tpu.memory_space<vmem>>, vector<256x512xf32>
    %cst = arith.constant dense<0.000000e+00> : vector<16x512xf32>
    %2 = tpu.matmul %0, %1, %cst {dimension_numbers = #tpu.dot_dimension_numbers<[1], [0], [0], [1], [0, 0, 1, 1], [], []>} : vector<16x256xf32>, vector<256x512xf32>, vector<16x512xf32> -> vector<16x512xf32>
    %c0_3 = arith.constant 0 : index
    %c0_4 = arith.constant 0 : index
    %3 = vector.load %arg3[%c0_3, %c0_4] : memref<1x512xf32, #tpu.memory_space<vmem>>, vector<1x512xf32>
    %4 = vector.broadcast %3 : vector<1x512xf32> to vector<16x512xf32>
    %5 = arith.addf %2, %4 : vector<16x512xf32>
    %cst_5 = arith.constant 0.00999999977 : f32
    %6 = vector.broadcast %cst_5 : f32 to vector<16x512xf32>
    %7 = arith.mulf %6, %5 : vector<16x512xf32>
    %8 = arith.maximumf %5, %7 : vector<16x512xf32>
    %c0_6 = arith.constant 0 : index
    %c0_7 = arith.constant 0 : index
    %9 = vector.load %arg4[%c0_6, %c0_7] : memref<512x256xf32, #tpu.memory_space<vmem>>, vector<512x256xf32>
    %cst_8 = arith.constant dense<0.000000e+00> : vector<16x256xf32>
    %10 = tpu.matmul %8, %9, %cst_8 {dimension_numbers = #tpu.dot_dimension_numbers<[1], [0], [0], [1], [0, 0, 1, 1], [], []>} : vector<16x512xf32>, vector<512x256xf32>, vector<16x256xf32> -> vector<16x256xf32>
    %c0_9 = arith.constant 0 : index
    %c0_10 = arith.constant 0 : index
    %11 = vector.load %arg5[%c0_9, %c0_10] : memref<1x256xf32, #tpu.memory_space<vmem>>, vector<1x256xf32>
    %12 = vector.broadcast %11 : vector<1x256xf32> to vector<16x256xf32>
    %13 = arith.addf %10, %12 : vector<16x256xf32>
    %c0_11 = arith.constant 0 : index
    %c0_12 = arith.constant 0 : index
    %14 = vector.load %arg6[%c0_11, %c0_12] : memref<16x256xf32, #tpu.memory_space<vmem>>, vector<16x256xf32>
    tpu.vector_store %arg6[%c0_11, %c0_12], %13 {strides = array<i32>} : memref<16x256xf32, #tpu.memory_space<vmem>>, vector<16x256xf32>,
    return
  }
  func.func @transform_0(%arg0: i32) -> (i32, i32) {
    %c0_i32 = arith.constant 0 : i32
    %c0_i32_0 = arith.constant 0 : i32
    return %arg0, %c0_i32 : i32, i32
  }
  func.func @transform_1(%arg0: i32) -> (i32, i32) {
    %c0_i32 = arith.constant 0 : i32
    %c0_i32_0 = arith.constant 0 : i32
    %c0_i32_1 = arith.constant 0 : i32
    return %c0_i32, %c0_i32_0 : i32, i32
  }
  func.func @transform_2(%arg0: i32) -> (i32, i32) {
    %c0_i32 = arith.constant 0 : i32
    %c0_i32_0 = arith.constant 0 : i32
    %c0_i32_1 = arith.constant 0 : i32
    return %c0_i32, %c0_i32_0 : i32, i32
  }
  func.func @transform_3(%arg0: i32) -> (i32, i32) {
    %c0_i32 = arith.constant 0 : i32
    %c0_i32_0 = arith.constant 0 : i32
    %c0_i32_1 = arith.constant 0 : i32
    return %c0_i32, %c0_i32_0 : i32, i32
  }
  func.func @transform_4(%arg0: i32) -> (i32, i32) {
    %c0_i32 = arith.constant 0 : i32
    %c0_i32_0 = arith.constant 0 : i32
    %c0_i32_1 = arith.constant 0 : i32
    return %c0_i32, %c0_i32_0 : i32, i32
  }
  func.func @transform_5(%arg0: i32) -> (i32, i32) {
    %c0_i32 = arith.constant 0 : i32
    %c0_i32_0 = arith.constant 0 : i32
    return %arg0, %c0_i32 : i32, i32
  }
}

</mosaic_0001>

<llo_original>
// kernel: tpu_custom_call.1
$region0: #{tpu_custom_call.1}
  #allocation0 [shape = 'u32[]', space=smem, size = 0x4, offset = 0x4, fixed_abs, tag = 'smem constant byte address 0x4 - core index']
  #allocation1 [shape = 'u32[144,128]{1,0:T(1,128)}', space=vmem, size = 0x12000, scoped, tag = 'internal scratch']
  %s0 = inlined_call_operand.hbm [shape: f32[16,256], index: 0, kind: input, shape index: {}]
  %s1 = inlined_call_operand.hbm [shape: f32[256,512], index: 1, kind: input, shape index: {}]
  %s2 = inlined_call_operand.vmem [shape: f32[1,512], index: 2, kind: input, shape index: {}]
  %s3 = inlined_call_operand.hbm [shape: f32[512,256], index: 3, kind: input, shape index: {}]
  %s4 = inlined_call_operand.vmem [shape: f32[1,256], index: 4, kind: input, shape index: {}]
  %s5 = inlined_call_operand.hbm [shape: f32[16,256], index: 5, kind: output, shape index: {}]
  %s6 = sld [smem:[#allocation0]]
  $region42: #{tpu_custom_call.1} parent=0
    _
  %s8 = ssub.s32 1, %s6
  %s9 = scalar_select 0, %s8, %s6
  $region1: #{tpu_custom_call.1} parent=0
    #allocation2 [shape = 'u8[16384]{0}', space=vmem, size = 0x4000, scoped, tag = 'input window, operand 0, single buffered']
    #allocation3 [shape = 's32[1]{0}', space=sflag, size = 0x4, scoped, tag = 'scoped memory for tpu_custom_call.1']
    #allocation4 [shape = 's32[1]{0}', space=sflag, size = 0x4, scoped, tag = 'scoped memory for tpu_custom_call.1']
    #allocation5 [shape = 'u8[524288]{0}', space=vmem, size = 0x80000, scoped, tag = 'input window, operand 1, single buffered']
    #allocation6 [shape = 's32[1]{0}', space=sflag, size = 0x4, scoped, tag = 'scoped memory for tpu_custom_call.1']
    #allocation7 [shape = 'u8[524288]{0}', space=vmem, size = 0x80000, scoped, tag = 'input window, operand 3, single buffered']
    #allocation8 [shape = 'u8[16384]{0}', space=vmem, size = 0x4000, scoped, tag = 'output window, operand 0, single buffered']
    %10 = vsyncpa [#allocation3], 0
    %11 = vsyncpa [#allocation6], 0
    %12 = vsyncpa [#allocation4], 0
    // Predicated region
    $region2: #{tpu_custom_call.1} parent=1 // pred_check
      _
    $region3: #{tpu_custom_call.1} parent=1 // pred_check_branch
      %14 = sbr.rel (0) target = $region5
    $region4: #{tpu_custom_call.1} parent=1 // pred_region
      %s16 = ssub.s32 512, 512
      %17 = vsyncadd [#allocation3], %s16
      %s18 = sshll.u32 [#allocation2], 4
      %s19 = int_to_ptr.vmem [resolvable:$true] %s18
      %24 = dma.hbm_to_vmem [thread:$0]  %s0, 512, %s19, [#allocation3], 256, 256, 16
    $region5: #{tpu_custom_call.1} parent=1 // pred_fallthru
      _
    // Predicated region
    $region6: #{tpu_custom_call.1} parent=1 // pred_check
      _
    $region7: #{tpu_custom_call.1} parent=1 // pred_check_branch
      %26 = sbr.rel (0) target = $region9
    $region8: #{tpu_custom_call.1} parent=1 // pred_region
      %s28 = ssub.s32 16384, 16384
      %29 = vsyncadd [#allocation6], %s28
      %s30 = sshll.u32 [#allocation5], 4
      %s31 = int_to_ptr.vmem [resolvable:$true] %s30
      %36 = dma.hbm_to_vmem [thread:$0]  %s1, 16384, %s31, [#allocation6], 512, 512, 32
    $region9: #{tpu_custom_call.1} parent=1 // pred_fallthru
      _
    // Predicated region
    $region10: #{tpu_custom_call.1} parent=1 // pred_check
      _
    $region11: #{tpu_custom_call.1} parent=1 // pred_check_branch
      %38 = sbr.rel (0) target = $region13
    $region12: #{tpu_custom_call.1} parent=1 // pred_region
      _
    $region13: #{tpu_custom_call.1} parent=1 // pred_fallthru
      _
    // Predicated region
    $region14: #{tpu_custom_call.1} parent=1 // pred_check
      _
    $region15: #{tpu_custom_call.1} parent=1 // pred_check_branch
      %40 = sbr.rel (0) target = $region17
    $region16: #{tpu_custom_call.1} parent=1 // pred_region
      %s42 = ssub.s32 16384, 16384
      %43 = vsyncadd [#allocation6], %s42
      %s44 = sshll.u32 [#allocation7], 4
      %s45 = int_to_ptr.vmem [resolvable:$true] %s44
      %50 = dma.hbm_to_vmem [thread:$0]  %s3, 16384, %s45, [#allocation6], 256, 256, 16
    $region17: #{tpu_custom_call.1} parent=1 // pred_fallthru
      _
    // Predicated region
    $region18: #{tpu_custom_call.1} parent=1 // pred_check
      _
    $region19: #{tpu_custom_call.1} parent=1 // pred_check_branch
      %52 = sbr.rel (0) target = $region21
    $region20: #{tpu_custom_call.1} parent=1 // pred_region
      _
    $region21: #{tpu_custom_call.1} parent=1 // pred_fallthru
      _
    // Predicated region
    $region22: #{tpu_custom_call.1} parent=1 // pred_check
      _
    $region23: #{tpu_custom_call.1} parent=1 // pred_check_branch
      %54 = sbr.rel (0) target = $region25
    $region24: #{tpu_custom_call.1} parent=1 // pred_region
      %55 = dma.done [#allocation3], 512
    $region25: #{tpu_custom_call.1} parent=1 // pred_fallthru
      _
    // Predicated region
    $region26: #{tpu_custom_call.1} parent=1 // pred_check
      _
    $region27: #{tpu_custom_call.1} parent=1 // pred_check_branch
      %57 = sbr.rel (0) target = $region29
    $region28: #{tpu_custom_call.1} parent=1 // pred_region
      %58 = dma.done [#allocation6], 16384
    $region29: #{tpu_custom_call.1} parent=1 // pred_fallthru
      _
    // Predicated region
    $region30: #{tpu_custom_call.1} parent=1 // pred_check
      _
    $region31: #{tpu_custom_call.1} parent=1 // pred_check_branch
      %60 = sbr.rel (0) target = $region33
    $region32: #{tpu_custom_call.1} parent=1 // pred_region
      %61 = dma.done [#allocation6], 16384
    $region33: #{tpu_custom_call.1} parent=1 // pred_fallthru
      _
    %v62 = vld [vmem:[#allocation2] sm:$0xff]
    %v63 = vld [vmem:[#allocation2 + $0x8] sm:$0xff]
    %v64 = vld [vmem:[#allocation2 + $0x10] sm:$0xff]
    %v65 = vld [vmem:[#allocation2 + $0x18] sm:$0xff]
    %v66 = vld [vmem:[#allocation5] sm:$0xff]
    %v67 = vld [vmem:[#allocation5 + $0x8] sm:$0xff]
    %v68 = vld [vmem:[#allocation5 + $0x10] sm:$0xff]
    %v69 = vld [vmem:[#allocation5 + $0x18] sm:$0xff]
    %v70 = vld [vmem:[#allocation5 + $0x20] sm:$0xff]
    %v71 = vld [vmem:[#allocation5 + $0x28] sm:$0xff]
    %v72 = vld [vmem:[#allocation5 + $0x30] sm:$0xff]
    %v73 = vld [vmem:[#allocation5 + $0x38] sm:$0xff]
    %v74 = vld [vmem:[#allocation5 + $0x40] sm:$0xff]
    %v75 = vld [vmem:[#allocation5 + $0x48] sm:$0xff]
    %v76 = vld [vmem:[#allocation5 + $0x50] sm:$0xff]
    %v77 = vld [vmem:[#allocation5 + $0x58] sm:$0xff]
    %v78 = vld [vmem:[#allocation5 + $0x60] sm:$0xff]
    %v79 = vld [vmem:[#allocation5 + $0x68] sm:$0xff]
    %v80 = vld [vmem:[#allocation5 + $0x70] sm:$0xff]
    %v81 = vld [vmem:[#allocation5 + $0x78] sm:$0xff]
    %v82 = vld [vmem:[#allocation5 + $0x80] sm:$0xff]
    %v83 = vld [vmem:[#allocation5 + $0x88] sm:$0xff]
    %v84 = vld [vmem:[#allocation5 + $0x90] sm:$0xff]
    %v85 = vld [vmem:[#allocation5 + $0x98] sm:$0xff]
    %v86 = vld [vmem:[#allocation5 + $0xa0] sm:$0xff]
    %v87 = vld [vmem:[#allocation5 + $0xa8] sm:$0xff]
    %v88 = vld [vmem:[#allocation5 + $0xb0] sm:$0xff]
    %v89 = vld [vmem:[#allocation5 + $0xb8] sm:$0xff]
    %v90 = vld [vmem:[#allocation5 + $0xc0] sm:$0xff]
    %v91 = vld [vmem:[#allocation5 + $0xc8] sm:$0xff]
    %v92 = vld [vmem:[#allocation5 + $0xd0] sm:$0xff]
    %v93 = vld [vmem:[#allocation5 + $0xd8] sm:$0xff]
    %v94 = vld [vmem:[#allocation5 + $0xe0] sm:$0xff]
    %v95 = vld [vmem:[#allocation5 + $0xe8] sm:$0xff]
    %v96 = vld [vmem:[#allocation5 + $0xf0] sm:$0xff]
    %v97 = vld [vmem:[#allocation5 + $0xf8] sm:$0xff]
    %v98 = vld [vmem:[#allocation5 + $0x100] sm:$0xff]
    %v99 = vld [vmem:[#allocation5 + $0x108] sm:$0xff]
    %v100 = vld [vmem:[#allocation5 + $0x110] sm:$0xff]
    %v101 = vld [vmem:[#allocation5 + $0x118] sm:$0xff]
    %v102 = vld [vmem:[#allocation5 + $0x120] sm:$0xff]
    %v103 = vld [vmem:[#allocation5 + $0x128] sm:$0xff]
    %v104 = vld [vmem:[#allocation5 + $0x130] sm:$0xff]
    %v105 = vld [vmem:[#allocation5 + $0x138] sm:$0xff]
    %v106 = vld [vmem:[#allocation5 + $0x140] sm:$0xff]
    %v107 = vld [vmem:[#allocation5 + $0x148] sm:$0xff]
    %v108 = vld [vmem:[#allocation5 + $0x150] sm:$0xff]
    %v109 = vld [vmem:[#allocation5 + $0x158] sm:$0xff]
    %v110 = vld [vmem:[#allocation5 + $0x160] sm:$0xff]
    %v111 = vld [vmem:[#allocation5 + $0x168] sm:$0xff]
    %v112 = vld [vmem:[#allocation5 + $0x170] sm:$0xff]
    %v113 = vld [vmem:[#allocation5 + $0x178] sm:$0xff]
    %v114 = vld [vmem:[#allocation5 + $0x180] sm:$0xff]
    %v115 = vld [vmem:[#allocation5 + $0x188] sm:$0xff]
    %v116 = vld [vmem:[#allocation5 + $0x190] sm:$0xff]
    %v117 = vld [vmem:[#allocation5 + $0x198] sm:$0xff]
    %v118 = vld [vmem:[#allocation5 + $0x1a0] sm:$0xff]
    %v119 = vld [vmem:[#allocation5 + $0x1a8] sm:$0xff]
    %v120 = vld [vmem:[#allocation5 + $0x1b0] sm:$0xff]
    %v121 = vld [vmem:[#allocation5 + $0x1b8] sm:$0xff]
    %v122 = vld [vmem:[#allocation5 + $0x1c0] sm:$0xff]
    %v123 = vld [vmem:[#allocation5 + $0x1c8] sm:$0xff]
    %v124 = vld [vmem:[#allocation5 + $0x1d0] sm:$0xff]
    %v125 = vld [vmem:[#allocation5 + $0x1d8] sm:$0xff]
    %v126 = vld [vmem:[#allocation5 + $0x1e0] sm:$0xff]
    %v127 = vld [vmem:[#allocation5 + $0x1e8] sm:$0xff]
    %v128 = vld [vmem:[#allocation5 + $0x1f0] sm:$0xff]
    %v129 = vld [vmem:[#allocation5 + $0x1f8] sm:$0xff]
    %v130 = vld [vmem:[#allocation5 + $0x200] sm:$0xff]
    %v131 = vld [vmem:[#allocation5 + $0x208] sm:$0xff]
    %v132 = vld [vmem:[#allocation5 + $0x210] sm:$0xff]
    %v133 = vld [vmem:[#allocation5 + $0x218] sm:$0xff]
    %v134 = vld [vmem:[#allocation5 + $0x220] sm:$0xff]
    %v135 = vld [vmem:[#allocation5 + $0x228] sm:$0xff]
    %v136 = vld [vmem:[#allocation5 + $0x230] sm:$0xff]
    %v137 = vld [vmem:[#allocation5 + $0x238] sm:$0xff]
    %v138 = vld [vmem:[#allocation5 + $0x240] sm:$0xff]
    %v139 = vld [vmem:[#allocation5 + $0x248] sm:$0xff]
    %v140 = vld [vmem:[#allocation5 + $0x250] sm:$0xff]
    %v141 = vld [vmem:[#allocation5 + $0x258] sm:$0xff]
    %v142 = vld [vmem:[#allocation5 + $0x260] sm:$0xff]
    %v143 = vld [vmem:[#allocation5 + $0x268] sm:$0xff]
    %v144 = vld [vmem:[#allocation5 + $0x270] sm:$0xff]
    %v145 = vld [vmem:[#allocation5 + $0x278] sm:$0xff]
    %v146 = vld [vmem:[#allocation5 + $0x280] sm:$0xff]
    %v147 = vld [vmem:[#allocation5 + $0x288] sm:$0xff]
    %v148 = vld [vmem:[#allocation5 + $0x290] sm:$0xff]
    %v149 = vld [vmem:[#allocation5 + $0x298] sm:$0xff]
    %v150 = vld [vmem:[#allocation5 + $0x2a0] sm:$0xff]
    %v151 = vld [vmem:[#allocation5 + $0x2a8] sm:$0xff]
    %v152 = vld [vmem:[#allocation5 + $0x2b0] sm:$0xff]
    %v153 = vld [vmem:[#allocation5 + $0x2b8] sm:$0xff]
    %v154 = vld [vmem:[#allocation5 + $0x2c0] sm:$0xff]
    %v155 = vld [vmem:[#allocation5 + $0x2c8] sm:$0xff]
    %v156 = vld [vmem:[#allocation5 + $0x2d0] sm:$0xff]
    %v157 = vld [vmem:[#allocation5 + $0x2d8] sm:$0xff]
    %v158 = vld [vmem:[#allocation5 + $0x2e0] sm:$0xff]
    %v159 = vld [vmem:[#allocation5 + $0x2e8] sm:$0xff]
    %v160 = vld [vmem:[#allocation5 + $0x2f0] sm:$0xff]
    %v161 = vld [vmem:[#allocation5 + $0x2f8] sm:$0xff]
    %v162 = vld [vmem:[#allocation5 + $0x300] sm:$0xff]
    %v163 = vld [vmem:[#allocation5 + $0x308] sm:$0xff]
    %v164 = vld [vmem:[#allocation5 + $0x310] sm:$0xff]
    %v165 = vld [vmem:[#allocation5 + $0x318] sm:$0xff]
    %v166 = vld [vmem:[#allocation5 + $0x320] sm:$0xff]
    %v167 = vld [vmem:[#allocation5 + $0x328] sm:$0xff]
    %v168 = vld [vmem:[#allocation5 + $0x330] sm:$0xff]
    %v169 = vld [vmem:[#allocation5 + $0x338] sm:$0xff]
    %v170 = vld [vmem:[#allocation5 + $0x340] sm:$0xff]
    %v171 = vld [vmem:[#allocation5 + $0x348] sm:$0xff]
    %v172 = vld [vmem:[#allocation5 + $0x350] sm:$0xff]
    %v173 = vld [vmem:[#allocation5 + $0x358] sm:$0xff]
    %v174 = vld [vmem:[#allocation5 + $0x360] sm:$0xff]
    %v175 = vld [vmem:[#allocation5 + $0x368] sm:$0xff]
    %v176 = vld [vmem:[#allocation5 + $0x370] sm:$0xff]
    %v177 = vld [vmem:[#allocation5 + $0x378] sm:$0xff]
    %v178 = vld [vmem:[#allocation5 + $0x380] sm:$0xff]
    %v179 = vld [vmem:[#allocation5 + $0x388] sm:$0xff]
    %v180 = vld [vmem:[#allocation5 + $0x390] sm:$0xff]
    %v181 = vld [vmem:[#allocation5 + $0x398] sm:$0xff]
    %v182 = vld [vmem:[#allocation5 + $0x3a0] sm:$0xff]
    %v183 = vld [vmem:[#allocation5 + $0x3a8] sm:$0xff]
    %v184 = vld [vmem:[#allocation5 + $0x3b0] sm:$0xff]
    %v185 = vld [vmem:[#allocation5 + $0x3b8] sm:$0xff]
    %v186 = vld [vmem:[#allocation5 + $0x3c0] sm:$0xff]
    %v187 = vld [vmem:[#allocation5 + $0x3c8] sm:$0xff]
    %v188 = vld [vmem:[#allocation5 + $0x3d0] sm:$0xff]
    %v189 = vld [vmem:[#allocation5 + $0x3d8] sm:$0xff]
    %v190 = vld [vmem:[#allocation5 + $0x3e0] sm:$0xff]
    %v191 = vld [vmem:[#allocation5 + $0x3e8] sm:$0xff]
    %v192 = vld [vmem:[#allocation5 + $0x3f0] sm:$0xff]
    %v193 = vld [vmem:[#allocation5 + $0x3f8] sm:$0xff]
    %v194 = vld [vmem:[%s2] sm:$0xf]
    %v196 = vlaneseq
    %v197 = vshrl.u32 %v196, 7
    %v198 = vsub.s32 0, %v197
    %v199 = vrot.slane %v194, %v198
    %v200 = vlaneseq
    %v201 = vshrl.u32 %v200, 7
    %v202 = vsub.s32 1, %v201
    %v203 = vrot.slane %v194, %v202
    %v204 = vlaneseq
    %v205 = vshrl.u32 %v204, 7
    %v206 = vsub.s32 2, %v205
    %v207 = vrot.slane %v194, %v206
    %v208 = vlaneseq
    %v209 = vshrl.u32 %v208, 7
    %v210 = vsub.s32 3, %v209
    %v211 = vrot.slane %v194, %v210
    %216 = vmatprep.subr.mxu0 %v67
    %217 = vmatpush1.msra.mxu0 %v66
    %218 = vmatprep.subr.mxu0 %v71
    %219 = vmatpush1.msra.mxu0 %v70
    %220 = vmatprep.subr.mxu0 %v75
    %221 = vmatpush1.msra.mxu0 %v74
    %222 = vmatprep.subr.mxu0 %v79
    %223 = vmatpush1.msra.mxu0 %v78
    %224 = vmatprep.subr.mxu0 %v83
    %225 = vmatpush1.msra.mxu0 %v82
    %226 = vmatprep.subr.mxu0 %v87
    %227 = vmatpush1.msra.mxu0 %v86
    %228 = vmatprep.subr.mxu0 %v91
    %229 = vmatpush1.msra.mxu0 %v90
    %230 = vmatprep.subr.mxu0 %v95
    %231 = vmatpush1.msra.mxu0 %v94
    %232 = vmatprep.subr.mxu0 %v99
    %233 = vmatpush1.msra.mxu0 %v98
    %234 = vmatprep.subr.mxu0 %v103
    %235 = vmatpush1.msra.mxu0 %v102
    %236 = vmatprep.subr.mxu0 %v107
    %237 = vmatpush1.msra.mxu0 %v106
    %238 = vmatprep.subr.mxu0 %v111
    %239 = vmatpush1.msra.mxu0 %v110
    %240 = vmatprep.subr.mxu0 %v115
    %241 = vmatpush1.msra.mxu0 %v114
    %242 = vmatprep.subr.mxu0 %v119
    %243 = vmatpush1.msra.mxu0 %v118
    %244 = vmatprep.subr.mxu0 %v123
    %245 = vmatpush1.msra.mxu0 %v122
    %246 = vmatprep.subr.mxu0 %v127
    %247 = vmatpush1.msra.mxu0 %v126
    %248 = vmatprep.subr.mxu0 %v131
    %249 = vmatpush1.msra.mxu0 %v130
    %250 = vmatprep.subr.mxu0 %v135
    %251 = vmatpush1.msra.mxu0 %v134
    %252 = vmatprep.subr.mxu0 %v139
    %253 = vmatpush1.msra.mxu0 %v138
    %254 = vmatprep.subr.mxu0 %v143
    %255 = vmatpush1.msra.mxu0 %v142
    %256 = vmatprep.subr.mxu0 %v147
    %257 = vmatpush1.msra.mxu0 %v146
    %258 = vmatprep.subr.mxu0 %v151
    %259 = vmatpush1.msra.mxu0 %v150
    %260 = vmatprep.subr.mxu0 %v155
    %261 = vmatpush1.msra.mxu0 %v154
    %262 = vmatprep.subr.mxu0 %v159
    %263 = vmatpush1.msra.mxu0 %v158
    %264 = vmatprep.subr.mxu0 %v163
    %265 = vmatpush1.msra.mxu0 %v162
    %266 = vmatprep.subr.mxu0 %v167
    %267 = vmatpush1.msra.mxu0 %v166
    %268 = vmatprep.subr.mxu0 %v171
    %269 = vmatpush1.msra.mxu0 %v170
    %270 = vmatprep.subr.mxu0 %v175
    %271 = vmatpush1.msra.mxu0 %v174
    %272 = vmatprep.subr.mxu0 %v179
    %273 = vmatpush1.msra.mxu0 %v178
    %274 = vmatprep.subr.mxu0 %v183
    %275 = vmatpush1.msra.mxu0 %v182
    %276 = vmatprep.subr.mxu0 %v187
    %277 = vmatpush1.msra.mxu0 %v186
    %278 = vmatprep.subr.mxu0 %v191
    %279 = vmatpush1.msra.mxu0 %v190
    %280 = vmatprep.mubr.f32.mxu0 %v63
    %281 = vmatmul.mubr.f32.gmra.mrb[0].mxu0 %v62
    %v282 = vpop.f32.mrb[0].mxu0
    %v283 = vadd.f32 %v199, %v282
    %v284 = vpop.f32.mrb[0].mxu0
    %v285 = vadd.f32 %v203, %v284
    %286 = vmatprep.mubr.f32.mxu0 %v65
    %287 = vmatmul.mubr.f32.gmra.mrb[0].mxu0 %v64
    %v288 = vpop.f32.mrb[0].mxu0
    %v289 = vadd.f32 %v199, %v288
    %v290 = vpop.f32.mrb[0].mxu0
    %v291 = vadd.f32 %v203, %v290
    %292 = vdwg.mxu0
    %293 = vmatprep.subr.mxu0 %v69
    %294 = vmatpush1.msra.mxu0 %v68
    %295 = vmatprep.subr.mxu0 %v73
    %296 = vmatpush1.msra.mxu0 %v72
    %297 = vmatprep.subr.mxu0 %v77
    %298 = vmatpush1.msra.mxu0 %v76
    %299 = vmatprep.subr.mxu0 %v81
    %300 = vmatpush1.msra.mxu0 %v80
    %301 = vmatprep.subr.mxu0 %v85
    %302 = vmatpush1.msra.mxu0 %v84
    %303 = vmatprep.subr.mxu0 %v89
    %304 = vmatpush1.msra.mxu0 %v88
    %305 = vmatprep.subr.mxu0 %v93
    %306 = vmatpush1.msra.mxu0 %v92
    %307 = vmatprep.subr.mxu0 %v97
    %308 = vmatpush1.msra.mxu0 %v96
    %309 = vmatprep.subr.mxu0 %v101
    %310 = vmatpush1.msra.mxu0 %v100
    %311 = vmatprep.subr.mxu0 %v105
    %312 = vmatpush1.msra.mxu0 %v104
    %313 = vmatprep.subr.mxu0 %v109
    %314 = vmatpush1.msra.mxu0 %v108
    %315 = vmatprep.subr.mxu0 %v113
    %316 = vmatpush1.msra.mxu0 %v112
    %317 = vmatprep.subr.mxu0 %v117
    %318 = vmatpush1.msra.mxu0 %v116
    %319 = vmatprep.subr.mxu0 %v121
    %320 = vmatpush1.msra.mxu0 %v120
    %321 = vmatprep.subr.mxu0 %v125
    %322 = vmatpush1.msra.mxu0 %v124
    %323 = vmatprep.subr.mxu0 %v129
    %324 = vmatpush1.msra.mxu0 %v128
    %325 = vmatprep.subr.mxu0 %v133
    %326 = vmatpush1.msra.mxu0 %v132
    %327 = vmatprep.subr.mxu0 %v137
    %328 = vmatpush1.msra.mxu0 %v136
    %329 = vmatprep.subr.mxu0 %v141
    %330 = vmatpush1.msra.mxu0 %v140
    %331 = vmatprep.subr.mxu0 %v145
    %332 = vmatpush1.msra.mxu0 %v144
    %333 = vmatprep.subr.mxu0 %v149
    %334 = vmatpush1.msra.mxu0 %v148
    %335 = vmatprep.subr.mxu0 %v153
    %336 = vmatpush1.msra.mxu0 %v152
    %337 = vmatprep.subr.mxu0 %v157
    %338 = vmatpush1.msra.mxu0 %v156
    %339 = vmatprep.subr.mxu0 %v161
    %340 = vmatpush1.msra.mxu0 %v160
    %341 = vmatprep.subr.mxu0 %v165
    %342 = vmatpush1.msra.mxu0 %v164
    %343 = vmatprep.subr.mxu0 %v169
    %344 = vmatpush1.msra.mxu0 %v168
    %345 = vmatprep.subr.mxu0 %v173
    %346 = vmatpush1.msra.mxu0 %v172
    %347 = vmatprep.subr.mxu0 %v177
    %348 = vmatpush1.msra.mxu0 %v176
    %349 = vmatprep.subr.mxu0 %v181
    %350 = vmatpush1.msra.mxu0 %v180
    %351 = vmatprep.subr.mxu0 %v185
    %352 = vmatpush1.msra.mxu0 %v184
    %353 = vmatprep.subr.mxu0 %v189
    %354 = vmatpush1.msra.mxu0 %v188
    %355 = vmatprep.subr.mxu0 %v193
    %356 = vmatpush1.msra.mxu0 %v192
    %357 = vmatprep.mubr.f32.mxu0 %v63
    %358 = vmatmul.mubr.f32.gmra.mrb[0].mxu0 %v62
    %v359 = vpop.f32.mrb[0].mxu0
    %v360 = vadd.f32 %v207, %v359
    %v361 = vpop.f32.mrb[0].mxu0
    %v362 = vadd.f32 %v211, %v361
    %363 = vmatprep.mubr.f32.mxu0 %v65
    %364 = vmatmul.mubr.f32.gmra.mrb[0].mxu0 %v64
    %v365 = vpop.f32.mrb[0].mxu0
    %v366 = vadd.f32 %v207, %v365
    %v367 = vpop.f32.mrb[0].mxu0
    %v368 = vadd.f32 %v211, %v367
    %369 = vdwg.mxu0
    %v370 = vmul.f32 %v283, 0.01
    %v371 = vmul.f32 %v285, 0.01
    %v372 = vmul.f32 %v360, 0.01
    %v373 = vmul.f32 %v362, 0.01
    %v374 = vmul.f32 %v289, 0.01
    %v375 = vmul.f32 %v291, 0.01
    %v376 = vmul.f32 %v366, 0.01
    %v377 = vmul.f32 %v368, 0.01
    %v378 = vmax.f32 %v283, %v370
    %v379 = vmax.f32 %v285, %v371
    %v380 = vmax.f32 %v360, %v372
    %v381 = vmax.f32 %v362, %v373
    %v382 = vmax.f32 %v289, %v374
    %v383 = vmax.f32 %v291, %v375
    %v384 = vmax.f32 %v366, %v376
    %v385 = vmax.f32 %v368, %v377
    %v386 = vld [vmem:[#allocation7] sm:$0xff]
    %v387 = vld [vmem:[#allocation7 + $0x8] sm:$0xff]
    %v388 = vld [vmem:[#allocation7 + $0x10] sm:$0xff]
    %v389 = vld [vmem:[#allocation7 + $0x18] sm:$0xff]
    %v390 = vld [vmem:[#allocation7 + $0x20] sm:$0xff]
    %v391 = vld [vmem:[#allocation7 + $0x28] sm:$0xff]
    %v392 = vld [vmem:[#allocation7 + $0x30] sm:$0xff]
    %v393 = vld [vmem:[#allocation7 + $0x38] sm:$0xff]
    %v394 = vld [vmem:[#allocation7 + $0x40] sm:$0xff]
    %v395 = vld [vmem:[#allocation7 + $0x48] sm:$0xff]
    %v396 = vld [vmem:[#allocation7 + $0x50] sm:$0xff]
    %v397 = vld [vmem:[#allocation7 + $0x58] sm:$0xff]
    %v398 = vld [vmem:[#allocation7 + $0x60] sm:$0xff]
    %v399 = vld [vmem:[#allocation7 + $0x68] sm:$0xff]
    %v400 = vld [vmem:[#allocation7 + $0x70] sm:$0xff]
    %v401 = vld [vmem:[#allocation7 + $0x78] sm:$0xff]
    %v402 = vld [vmem:[#allocation7 + $0x80] sm:$0xff]
    %v403 = vld [vmem:[#allocation7 + $0x88] sm:$0xff]
    %v404 = vld [vmem:[#allocation7 + $0x90] sm:$0xff]
    %v405 = vld [vmem:[#allocation7 + $0x98] sm:$0xff]
    %v406 = vld [vmem:[#allocation7 + $0xa0] sm:$0xff]
    %v407 = vld [vmem:[#allocation7 + $0xa8] sm:$0xff]
    %v408 = vld [vmem:[#allocation7 + $0xb0] sm:$0xff]
    %v409 = vld [vmem:[#allocation7 + $0xb8] sm:$0xff]
    %v410 = vld [vmem:[#allocation7 + $0xc0] sm:$0xff]
    %v411 = vld [vmem:[#allocation7 + $0xc8] sm:$0xff]
    %v412 = vld [vmem:[#allocation7 + $0xd0] sm:$0xff]
    %v413 = vld [vmem:[#allocation7 + $0xd8] sm:$0xff]
    %v414 = vld [vmem:[#allocation7 + $0xe0] sm:$0xff]
    %v415 = vld [vmem:[#allocation7 + $0xe8] sm:$0xff]
    %v416 = vld [vmem:[#allocation7 + $0xf0] sm:$0xff]
    %v417 = vld [vmem:[#allocation7 + $0xf8] sm:$0xff]
    %v418 = vld [vmem:[#allocation7 + $0x100] sm:$0xff]
    %v419 = vld [vmem:[#allocation7 + $0x108] sm:$0xff]
    %v420 = vld [vmem:[#allocation7 + $0x110] sm:$0xff]
    %v421 = vld [vmem:[#allocation7 + $0x118] sm:$0xff]
    %v422 = vld [vmem:[#allocation7 + $0x120] sm:$0xff]
    %v423 = vld [vmem:[#allocation7 + $0x128] sm:$0xff]
    %v424 = vld [vmem:[#allocation7 + $0x130] sm:$0xff]
    %v425 = vld [vmem:[#allocation7 + $0x138] sm:$0xff]
    %v426 = vld [vmem:[#allocation7 + $0x140] sm:$0xff]
    %v427 = vld [vmem:[#allocation7 + $0x148] sm:$0xff]
    %v428 = vld [vmem:[#allocation7 + $0x150] sm:$0xff]
    %v429 = vld [vmem:[#allocation7 + $0x158] sm:$0xff]
    %v430 = vld [vmem:[#allocation7 + $0x160] sm:$0xff]
    %v431 = vld [vmem:[#allocation7 + $0x168] sm:$0xff]
    %v432 = vld [vmem:[#allocation7 + $0x170] sm:$0xff]
    %v433 = vld [vmem:[#allocation7 + $0x178] sm:$0xff]
    %v434 = vld [vmem:[#allocation7 + $0x180] sm:$0xff]
    %v435 = vld [vmem:[#allocation7 + $0x188] sm:$0xff]
    %v436 = vld [vmem:[#allocation7 + $0x190] sm:$0xff]
    %v437 = vld [vmem:[#allocation7 + $0x198] sm:$0xff]
    %v438 = vld [vmem:[#allocation7 + $0x1a0] sm:$0xff]
    %v439 = vld [vmem:[#allocation7 + $0x1a8] sm:$0xff]
    %v440 = vld [vmem:[#allocation7 + $0x1b0] sm:$0xff]
    %v441 = vld [vmem:[#allocation7 + $0x1b8] sm:$0xff]
    %v442 = vld [vmem:[#allocation7 + $0x1c0] sm:$0xff]
    %v443 = vld [vmem:[#allocation7 + $0x1c8] sm:$0xff]
    %v444 = vld [vmem:[#allocation7 + $0x1d0] sm:$0xff]
    %v445 = vld [vmem:[#allocation7 + $0x1d8] sm:$0xff]
    %v446 = vld [vmem:[#allocation7 + $0x1e0] sm:$0xff]
    %v447 = vld [vmem:[#allocation7 + $0x1e8] sm:$0xff]
    %v448 = vld [vmem:[#allocation7 + $0x1f0] sm:$0xff]
    %v449 = vld [vmem:[#allocation7 + $0x1f8] sm:$0xff]
    %v450 = vld [vmem:[#allocation7 + $0x200] sm:$0xff]
    %v451 = vld [vmem:[#allocation7 + $0x208] sm:$0xff]
    %v452 = vld [vmem:[#allocation7 + $0x210] sm:$0xff]
    %v453 = vld [vmem:[#allocation7 + $0x218] sm:$0xff]
    %v454 = vld [vmem:[#allocation7 + $0x220] sm:$0xff]
    %v455 = vld [vmem:[#allocation7 + $0x228] sm:$0xff]
    %v456 = vld [vmem:[#allocation7 + $0x230] sm:$0xff]
    %v457 = vld [vmem:[#allocation7 + $0x238] sm:$0xff]
    %v458 = vld [vmem:[#allocation7 + $0x240] sm:$0xff]
    %v459 = vld [vmem:[#allocation7 + $0x248] sm:$0xff]
    %v460 = vld [vmem:[#allocation7 + $0x250] sm:$0xff]
    %v461 = vld [vmem:[#allocation7 + $0x258] sm:$0xff]
    %v462 = vld [vmem:[#allocation7 + $0x260] sm:$0xff]
    %v463 = vld [vmem:[#allocation7 + $0x268] sm:$0xff]
    %v464 = vld [vmem:[#allocation7 + $0x270] sm:$0xff]
    %v465 = vld [vmem:[#allocation7 + $0x278] sm:$0xff]
    %v466 = vld [vmem:[#allocation7 + $0x280] sm:$0xff]
    %v467 = vld [vmem:[#allocation7 + $0x288] sm:$0xff]
    %v468 = vld [vmem:[#allocation7 + $0x290] sm:$0xff]
    %v469 = vld [vmem:[#allocation7 + $0x298] sm:$0xff]
    %v470 = vld [vmem:[#allocation7 + $0x2a0] sm:$0xff]
    %v471 = vld [vmem:[#allocation7 + $0x2a8] sm:$0xff]
    %v472 = vld [vmem:[#allocation7 + $0x2b0] sm:$0xff]
    %v473 = vld [vmem:[#allocation7 + $0x2b8] sm:$0xff]
    %v474 = vld [vmem:[#allocation7 + $0x2c0] sm:$0xff]
    %v475 = vld [vmem:[#allocation7 + $0x2c8] sm:$0xff]
    %v476 = vld [vmem:[#allocation7 + $0x2d0] sm:$0xff]
    %v477 = vld [vmem:[#allocation7 + $0x2d8] sm:$0xff]
    %v478 = vld [vmem:[#allocation7 + $0x2e0] sm:$0xff]
    %v479 = vld [vmem:[#allocation7 + $0x2e8] sm:$0xff]
    %v480 = vld [vmem:[#allocation7 + $0x2f0] sm:$0xff]
    %v481 = vld [vmem:[#allocation7 + $0x2f8] sm:$0xff]
    %v482 = vld [vmem:[#allocation7 + $0x300] sm:$0xff]
    %v483 = vld [vmem:[#allocation7 + $0x308] sm:$0xff]
    %v484 = vld [vmem:[#allocation7 + $0x310] sm:$0xff]
    %v485 = vld [vmem:[#allocation7 + $0x318] sm:$0xff]
    %v486 = vld [vmem:[#allocation7 + $0x320] sm:$0xff]
    %v487 = vld [vmem:[#allocation7 + $0x328] sm:$0xff]
    %v488 = vld [vmem:[#allocation7 + $0x330] sm:$0xff]
    %v489 = vld [vmem:[#allocation7 + $0x338] sm:$0xff]
    %v490 = vld [vmem:[#allocation7 + $0x340] sm:$0xff]
    %v491 = vld [vmem:[#allocation7 + $0x348] sm:$0xff]
    %v492 = vld [vmem:[#allocation7 + $0x350] sm:$0xff]
    %v493 = vld [vmem:[#allocation7 + $0x358] sm:$0xff]
    %v494 = vld [vmem:[#allocation7 + $0x360] sm:$0xff]
    %v495 = vld [vmem:[#allocation7 + $0x368] sm:$0xff]
    %v496 = vld [vmem:[#allocation7 + $0x370] sm:$0xff]
    %v497 = vld [vmem:[#allocation7 + $0x378] sm:$0xff]
    %v498 = vld [vmem:[#allocation7 + $0x380] sm:$0xff]
    %v499 = vld [vmem:[#allocation7 + $0x388] sm:$0xff]
    %v500 = vld [vmem:[#allocation7 + $0x390] sm:$0xff]
    %v501 = vld [vmem:[#allocation7 + $0x398] sm:$0xff]
    %v502 = vld [vmem:[#allocation7 + $0x3a0] sm:$0xff]
    %v503 = vld [vmem:[#allocation7 + $0x3a8] sm:$0xff]
    %v504 = vld [vmem:[#allocation7 + $0x3b0] sm:$0xff]
    %v505 = vld [vmem:[#allocation7 + $0x3b8] sm:$0xff]
    %v506 = vld [vmem:[#allocation7 + $0x3c0] sm:$0xff]
    %v507 = vld [vmem:[#allocation7 + $0x3c8] sm:$0xff]
    %v508 = vld [vmem:[#allocation7 + $0x3d0] sm:$0xff]
    %v509 = vld [vmem:[#allocation7 + $0x3d8] sm:$0xff]
    %v510 = vld [vmem:[#allocation7 + $0x3e0] sm:$0xff]
    %v511 = vld [vmem:[#allocation7 + $0x3e8] sm:$0xff]
    %v512 = vld [vmem:[#allocation7 + $0x3f0] sm:$0xff]
    %v513 = vld [vmem:[#allocation7 + $0x3f8] sm:$0xff]
    %v514 = vld [vmem:[%s4] sm:$0x3]
    %v516 = vlaneseq
    %v517 = vshrl.u32 %v516, 7
    %v518 = vsub.s32 0, %v517
    %v519 = vrot.slane %v514, %v518
    %v520 = vlaneseq
    %v521 = vshrl.u32 %v520, 7
    %v522 = vsub.s32 1, %v521
    %v523 = vrot.slane %v514, %v522
    %526 = vmatprep.subr.mxu0 %v387
    %527 = vmatpush1.msra.mxu0 %v386
    %528 = vmatprep.subr.mxu0 %v389
    %529 = vmatpush1.msra.mxu0 %v388
    %530 = vmatprep.subr.mxu0 %v391
    %531 = vmatpush1.msra.mxu0 %v390
    %532 = vmatprep.subr.mxu0 %v393
    %533 = vmatpush1.msra.mxu0 %v392
    %534 = vmatprep.subr.mxu0 %v395
    %535 = vmatpush1.msra.mxu0 %v394
    %536 = vmatprep.subr.mxu0 %v397
    %537 = vmatpush1.msra.mxu0 %v396
    %538 = vmatprep.subr.mxu0 %v399
    %539 = vmatpush1.msra.mxu0 %v398
    %540 = vmatprep.subr.mxu0 %v401
    %541 = vmatpush1.msra.mxu0 %v400
    %542 = vmatprep.subr.mxu0 %v403
    %543 = vmatpush1.msra.mxu0 %v402
    %544 = vmatprep.subr.mxu0 %v405
    %545 = vmatpush1.msra.mxu0 %v404
    %546 = vmatprep.subr.mxu0 %v407
    %547 = vmatpush1.msra.mxu0 %v406
    %548 = vmatprep.subr.mxu0 %v409
    %549 = vmatpush1.msra.mxu0 %v408
    %550 = vmatprep.subr.mxu0 %v411
    %551 = vmatpush1.msra.mxu0 %v410
    %552 = vmatprep.subr.mxu0 %v413
    %553 = vmatpush1.msra.mxu0 %v412
    %554 = vmatprep.subr.mxu0 %v415
    %555 = vmatpush1.msra.mxu0 %v414
    %556 = vmatprep.subr.mxu0 %v417
    %557 = vmatpush1.msra.mxu0 %v416
    %558 = vmatprep.subr.mxu0 %v419
    %559 = vmatpush1.msra.mxu0 %v418
    %560 = vmatprep.subr.mxu0 %v421
    %561 = vmatpush1.msra.mxu0 %v420
    %562 = vmatprep.subr.mxu0 %v423
    %563 = vmatpush1.msra.mxu0 %v422
    %564 = vmatprep.subr.mxu0 %v425
    %565 = vmatpush1.msra.mxu0 %v424
    %566 = vmatprep.subr.mxu0 %v427
    %567 = vmatpush1.msra.mxu0 %v426
    %568 = vmatprep.subr.mxu0 %v429
    %569 = vmatpush1.msra.mxu0 %v428
    %570 = vmatprep.subr.mxu0 %v431
    %571 = vmatpush1.msra.mxu0 %v430
    %572 = vmatprep.subr.mxu0 %v433
    %573 = vmatpush1.msra.mxu0 %v432
    %574 = vmatprep.subr.mxu0 %v435
    %575 = vmatpush1.msra.mxu0 %v434
    %576 = vmatprep.subr.mxu0 %v437
    %577 = vmatpush1.msra.mxu0 %v436
    %578 = vmatprep.subr.mxu0 %v439
    %579 = vmatpush1.msra.mxu0 %v438
    %580 = vmatprep.subr.mxu0 %v441
    %581 = vmatpush1.msra.mxu0 %v440
    %582 = vmatprep.subr.mxu0 %v443
    %583 = vmatpush1.msra.mxu0 %v442
    %584 = vmatprep.subr.mxu0 %v445
    %585 = vmatpush1.msra.mxu0 %v444
    %586 = vmatprep.subr.mxu0 %v447
    %587 = vmatpush1.msra.mxu0 %v446
    %588 = vmatprep.subr.mxu0 %v449
    %589 = vmatpush1.msra.mxu0 %v448
    %590 = vmatprep.mubr.f32.mxu0 %v379
    %591 = vmatmul.mubr.f32.gmra.mrb[0].mxu0 %v378
    %v592 = vpop.f32.mrb[0].mxu0
    %v593 = vadd.f32 %v519, %v592
    %v594 = vpop.f32.mrb[0].mxu0
    %v595 = vadd.f32 %v523, %v594
    %596 = vmatprep.mubr.f32.mxu0 %v383
    %597 = vmatmul.mubr.f32.gmra.mrb[0].mxu0 %v382
    %v598 = vpop.f32.mrb[0].mxu0
    %v599 = vadd.f32 %v519, %v598
    %v600 = vpop.f32.mrb[0].mxu0
    %v601 = vadd.f32 %v523, %v600
    %602 = vdwg.mxu0
    %603 = vmatprep.subr.mxu0 %v451
    %604 = vmatpush1.msra.mxu0 %v450
    %605 = vmatprep.subr.mxu0 %v453
    %606 = vmatpush1.msra.mxu0 %v452
    %607 = vmatprep.subr.mxu0 %v455
    %608 = vmatpush1.msra.mxu0 %v454
    %609 = vmatprep.subr.mxu0 %v457
    %610 = vmatpush1.msra.mxu0 %v456
    %611 = vmatprep.subr.mxu0 %v459
    %612 = vmatpush1.msra.mxu0 %v458
    %613 = vmatprep.subr.mxu0 %v461
    %614 = vmatpush1.msra.mxu0 %v460
    %615 = vmatprep.subr.mxu0 %v463
    %616 = vmatpush1.msra.mxu0 %v462
    %617 = vmatprep.subr.mxu0 %v465
    %618 = vmatpush1.msra.mxu0 %v464
    %619 = vmatprep.subr.mxu0 %v467
    %620 = vmatpush1.msra.mxu0 %v466
    %621 = vmatprep.subr.mxu0 %v469
    %622 = vmatpush1.msra.mxu0 %v468
    %623 = vmatprep.subr.mxu0 %v471
    %624 = vmatpush1.msra.mxu0 %v470
    %625 = vmatprep.subr.mxu0 %v473
    %626 = vmatpush1.msra.mxu0 %v472
    %627 = vmatprep.subr.mxu0 %v475
    %628 = vmatpush1.msra.mxu0 %v474
    %629 = vmatprep.subr.mxu0 %v477
    %630 = vmatpush1.msra.mxu0 %v476
    %631 = vmatprep.subr.mxu0 %v479
    %632 = vmatpush1.msra.mxu0 %v478
    %633 = vmatprep.subr.mxu0 %v481
    %634 = vmatpush1.msra.mxu0 %v480
    %635 = vmatprep.subr.mxu0 %v483
    %636 = vmatpush1.msra.mxu0 %v482
    %637 = vmatprep.subr.mxu0 %v485
    %638 = vmatpush1.msra.mxu0 %v484
    %639 = vmatprep.subr.mxu0 %v487
    %640 = vmatpush1.msra.mxu0 %v486
    %641 = vmatprep.subr.mxu0 %v489
    %642 = vmatpush1.msra.mxu0 %v488
    %643 = vmatprep.subr.mxu0 %v491
    %644 = vmatpush1.msra.mxu0 %v490
    %645 = vmatprep.subr.mxu0 %v493
    %646 = vmatpush1.msra.mxu0 %v492
    %647 = vmatprep.subr.mxu0 %v495
    %648 = vmatpush1.msra.mxu0 %v494
    %649 = vmatprep.subr.mxu0 %v497
    %650 = vmatpush1.msra.mxu0 %v496
    %651 = vmatprep.subr.mxu0 %v499
    %652 = vmatpush1.msra.mxu0 %v498
    %653 = vmatprep.subr.mxu0 %v501
    %654 = vmatpush1.msra.mxu0 %v500
    %655 = vmatprep.subr.mxu0 %v503
    %656 = vmatpush1.msra.mxu0 %v502
    %657 = vmatprep.subr.mxu0 %v505
    %658 = vmatpush1.msra.mxu0 %v504
    %659 = vmatprep.subr.mxu0 %v507
    %660 = vmatpush1.msra.mxu0 %v506
    %661 = vmatprep.subr.mxu0 %v509
    %662 = vmatpush1.msra.mxu0 %v508
    %663 = vmatprep.subr.mxu0 %v511
    %664 = vmatpush1.msra.mxu0 %v510
    %665 = vmatprep.subr.mxu0 %v513
    %666 = vmatpush1.msra.mxu0 %v512
    %667 = vmatprep.mubr.f32.mxu0 %v381
    %668 = vmatmul.mubr.f32.gmra.mrb[0].mxu0 %v380
    %v669 = vpop.f32.mrb[0].mxu0
    %v670 = vadd.f32 %v593, %v669
    %v671 = vpop.f32.mrb[0].mxu0
    %v672 = vadd.f32 %v595, %v671
    %673 = vmatprep.mubr.f32.mxu0 %v385
    %674 = vmatmul.mubr.f32.gmra.mrb[0].mxu0 %v384
    %v675 = vpop.f32.mrb[0].mxu0
    %v676 = vadd.f32 %v599, %v675
    %v677 = vpop.f32.mrb[0].mxu0
    %v678 = vadd.f32 %v601, %v677
    %679 = vdwg.mxu0
    %680 = vst [vmem:[#allocation8] sm:$0xff] %v670
    %681 = vst [vmem:[#allocation8 + $0x8] sm:$0xff] %v672
    %682 = vst [vmem:[#allocation8 + $0x10] sm:$0xff] %v676
    %683 = vst [vmem:[#allocation8 + $0x18] sm:$0xff] %v678
    // Predicated region
    $region34: #{tpu_custom_call.1} parent=1 // pred_check
      _
    $region35: #{tpu_custom_call.1} parent=1 // pred_check_branch
      %685 = sbr.rel (0) target = $region37
    $region36: #{tpu_custom_call.1} parent=1 // pred_region
      %s687 = ssub.s32 512, 512
      %688 = vsyncadd [#allocation4], %s687
      %s689 = sshll.u32 [#allocation8], 4
      %s690 = int_to_ptr.vmem [resolvable:$true] %s689
      %695 = dma.vmem_to_hbm [thread:$0]  %s690, 512, %s5, [#allocation4], 256, 256, 16
    $region37: #{tpu_custom_call.1} parent=1 // pred_fallthru
      _
    // Predicated region
    $region38: #{tpu_custom_call.1} parent=1 // pred_check
      _
    $region39: #{tpu_custom_call.1} parent=1 // pred_check_branch
      %697 = sbr.rel (0) target = $region41
    $region40: #{tpu_custom_call.1} parent=1 // pred_region
      %698 = dma.done [#allocation4], 512
    $region41: #{tpu_custom_call.1} parent=1 // pred_fallthru
      _
    %699 = vsyncpa [#allocation3], 1
    %700 = vsyncpa [#allocation6], 1
    %701 = vsyncpa [#allocation4], 1

</llo_original>
